<compile_context>
chip_gen: v7x
topology: tpu7x:2x2x1
jax: 0.10.0
libtpu: 0.0.40
codegen_flags: <defaults>
</compile_context>

<pallas_src>
import functools
from collections import OrderedDict

import jax
import jax.numpy as jnp
import numpy as np
from jax.experimental import pallas as pl
from jax.experimental.pallas import tpu as pltpu


def _round_up(x, m):
    return ((x + m - 1) // m) * m


def _vmem_limit_bytes():
    """~48 MiB on v7x (64 MiB physical), ~96 MiB on v5e/v6e (128 MiB physical)."""
    try:
        cap = int(pltpu.get_tpu_info().vmem_capacity_bytes)
    except Exception:
        cap = 64 * 1024 * 1024
    return max(32 << 20, min((cap * 3) // 4, 96 << 20))


def _choose_tiles(Sp, Dp, Np, psize, budget):
    """Largest (ts, tk, tn) whose per-stage resident VMEM set fits the budget."""
    s_cands = [t for t in (512, 256, 128, 64, 32, 16, 8) if Sp % t == 0]
    d_cands = [t for t in (512, 256, 128) if Dp % t == 0]
    for ts in s_cands:
        for tn in d_cands:
            for tk in d_cands:
                stage1 = (2 * (ts * tk * 2 + tk * tn * 2 + Np * tk * 2
                               + Np * ts * tn * psize)     # dbl-buffered in/out
                          + Np * ts * tk * 2               # stacked-x scratch
                          + Np * ts * tn * 4)              # f32 accumulator
                stage2 = 2 * (Np * ts * tn * psize         # partials block
                              + ts * tn * 4                # output block
                              + Np * tn * 4 + tn * 4)      # Gexp + bias
                if max(stage1, stage2) <= budget:
                    return ts, tk, tn
    return s_cands[-1], d_cands[-1], d_cands[-1]


# ----------------------------------------------------------------------------
# FunctionalRelationships bookkeeping (ported from the PyTorch __init__)
# ----------------------------------------------------------------------------
def build_variable_masks(variables):
    """Returns (output_shape, OrderedDict[name -> bool mask of shape (D,)])."""
    output_shape = sum(int(np.prod(shape)) for shape in variables.values())
    masks = OrderedDict()
    last_idx = 0
    for name, shape in variables.items():
        numel = int(np.prod(shape))
        mask = np.zeros(output_shape, dtype=bool)
        mask[last_idx:last_idx + numel] = True
        masks[name] = jnp.asarray(mask)
        last_idx += numel
    return output_shape, masks


def stacked_mask_matrix(variables, output_shape):
    """M[n, d] = 1 if flat dim d belongs to node n (shape [N, D], float32)."""
    num_nodes = len(variables)
    m = np.zeros((num_nodes, output_shape), dtype=np.float32)
    last_idx = 0
    for n, shape in enumerate(variables.values()):
        numel = int(np.prod(shape))
        m[n, last_idx:last_idx + numel] = 1.0
        last_idx += numel
    return jnp.asarray(m)


# ----------------------------------------------------------------------------
# Stage 1: per-node partials  P[n, s, j] = sum_i x[s,i] * mask[n,i] * W[i,j]
# Grid: (S tiles, Dp//tn, Dp//tk); node loop lives INSIDE the kernel.
# ----------------------------------------------------------------------------
def _node_partials_kernel(x_ref, w_ref, mask_ref, p_ref, xs_ref, acc_ref):
    # x_ref:    (ts, tk)      bf16   sample tile (shared across nodes / j)
    # w_ref:    (tk, tn)      bf16   weight tile
    # mask_ref: (Np, tk)      bf16   per-node input masks (this k tile)
    # p_ref:    (Np, ts, tn)         per-node partials (output)
    # xs_ref:   (Np*ts, tk)   bf16   scratch: stacked masked copies of x
    # acc_ref:  (Np*ts, tn)   f32    scratch: K accumulator
    num_nodes, ts, _ = p_ref.shape
    k = pl.program_id(2)

    @pl.when(k == 0)
    def _():
        acc_ref[...] = jnp.zeros_like(acc_ref)

    x = x_ref[...]
    # Stack the Np masked copies of x along rows so a single matmul with
    # M = Np*ts rows replaces Np skinny ones (full MXU utilization even when
    # the sample tile is small); W / x / mask tiles are streamed once.
    for n in range(num_nodes):                       # static unroll (Np small)
        xs_ref[n * ts:(n + 1) * ts, :] = x * mask_ref[n:n + 1, :]
    acc_ref[...] += jnp.dot(xs_ref[...], w_ref[...],
                            preferred_element_type=jnp.float32)

    @pl.when(k == pl.num_programs(2) - 1)
    def _():
        for n in range(num_nodes):
            p_ref[n] = acc_ref[n * ts:(n + 1) * ts, :].astype(p_ref.dtype)


# ----------------------------------------------------------------------------
# Stage 2: out[b,s,j] = bias[j] + sum_n Gexp[b,n,j] * P[n,s,j]
# Grid: (S tiles, Dp//tn, B) with B innermost so P / bias stay VMEM-resident.
# ----------------------------------------------------------------------------
def _graph_combine_kernel(p_ref, gexp_ref, bias_ref, o_ref, *, num_nodes):
    # p_ref:    (Np, ts, tn)        per-node partials (resident across B loop)
    # gexp_ref: (1, Np, tn)  f32    Gexp[b, n, j] = G[b, n, node(j)]
    # bias_ref: (1, tn)      f32
    # o_ref:    (1, ts, tn)  f32
    ts, tn = o_ref.shape[1], o_ref.shape[2]
    acc = jnp.broadcast_to(bias_ref[...], (ts, tn)).astype(jnp.float32)
    # Unrolled mul+add stream over real nodes only (padded nodes contribute 0).
    for n in range(num_nodes):
        acc = acc + p_ref[n].astype(jnp.float32) * gexp_ref[0, n:n + 1, :]
    o_ref[0] = acc


# ----------------------------------------------------------------------------
# Wrapper: parameter prep (hoistable) + the two Pallas stages
# ----------------------------------------------------------------------------
def prepare_linear_params(weights, bias, node_mask):
    """Pad / cast the static operands once (reusable across forward calls)."""
    D = weights.shape[0]
    N = node_mask.shape[0]
    Dp = _round_up(max(D, 128), 128)
    Np = _round_up(max(N, 8), 8)
    w_pad = jnp.zeros((Dp, Dp), jnp.float32).at[:D, :D].set(weights.astype(jnp.float32))
    b_pad = jnp.zeros((1, Dp), jnp.float32).at[0, :D].set(bias.astype(jnp.float32))
    m_pad = jnp.zeros((Np, Dp), jnp.float32).at[:N, :D].set(node_mask.astype(jnp.float32))
    return dict(
        w_bf=w_pad.astype(jnp.bfloat16),       # MXU operand
        m_bf=m_pad.astype(jnp.bfloat16),       # 0/1 mask, exact in bf16
        m_f32=m_pad,
        b_pad=b_pad,
        D=D, N=N, Dp=Dp, Np=Np,
    )


def linear_functional_relationships_pallas(x_flat, graphs, params,
                                           *, partials_dtype=jnp.float32):
    """x_flat: [S, D], graphs: [B, N, N].  Returns out: [B, S, D] f32 with
        out[b, s, j] = sum_i x[s, i] * G[b, node(i), node(j)] * W[i, j] + bias[j]
    partials_dtype=jnp.bfloat16 halves the inter-stage HBM/VMEM traffic at the
    cost of ~bf16 rounding of P (loosen tolerances if used)."""
    S, D = x_flat.shape
    B, N, _ = graphs.shape
    assert D == params["D"] and N == params["N"]
    Dp, Np = params["Dp"], params["Np"]
    Sp = _round_up(max(S, 8), 8)

    vmem_limit = _vmem_limit_bytes()
    psize = np.dtype(partials_dtype).itemsize
    ts, tk, tn = _choose_tiles(Sp, Dp, Np, psize, vmem_limit // 2)

    x_bf = (jnp.zeros((Sp, Dp), jnp.float32)
            .at[:S, :D].set(x_flat.astype(jnp.float32)).astype(jnp.bfloat16))
    g_pad = (jnp.zeros((B, Np, Np), jnp.float32)
             .at[:, :N, :N].set(graphs.astype(jnp.float32)))
    # Gexp[b, n, j] = G[b, n, node(j)] : tiny (B*Np*Dp), built once in XLA so
    # stage 2 is a pure VPU mul+add stream (no per-step sub-8-row MXU matmul).
    gexp = jnp.einsum("bnm,mj->bnj", g_pad, params["m_f32"])

    # ---- stage 1: P[n] = (x * mask[n]) @ W  ->  [Np, Sp, Dp] ----------------
    partials = pl.pallas_call(
        _node_partials_kernel,
        out_shape=jax.ShapeDtypeStruct((Np, Sp, Dp), partials_dtype),
        grid_spec=pltpu.PrefetchScalarGridSpec(
            num_scalar_prefetch=0,
            grid=(Sp // ts, Dp // tn, Dp // tk),
            in_specs=[
                pl.BlockSpec((ts, tk), lambda si, j, k: (si, k)),   # samples
                pl.BlockSpec((tk, tn), lambda si, j, k: (k, j)),    # weights
                pl.BlockSpec((Np, tk), lambda si, j, k: (0, k)),    # node masks
            ],
            out_specs=pl.BlockSpec((Np, ts, tn), lambda si, j, k: (0, si, j)),
            scratch_shapes=[
                pltpu.VMEM((Np * ts, tk), jnp.bfloat16),   # stacked masked x
                pltpu.VMEM((Np * ts, tn), jnp.float32),    # K accumulator
            ],
        ),
        compiler_params=pltpu.CompilerParams(
            dimension_semantics=("parallel", "parallel", "arbitrary"),
            vmem_limit_bytes=vmem_limit,
        ),
    )(x_bf, params["w_bf"], params["m_bf"])

    # ---- stage 2: out[b] = bias + sum_n Gexp[b,n,:] * P[n] ------------------
    # B innermost: partials / bias block indices are constant over b, so they
    # stay VMEM-resident; only the tiny Gexp slice and the output block move.
    out = pl.pallas_call(
        functools.partial(_graph_combine_kernel, num_nodes=N),
        out_shape=jax.ShapeDtypeStruct((B, Sp, Dp), jnp.float32),
        grid_spec=pltpu.PrefetchScalarGridSpec(
            num_scalar_prefetch=0,
            grid=(Sp // ts, Dp // tn, B),
            in_specs=[
                pl.BlockSpec((Np, ts, tn), lambda si, j, b: (0, si, j)),  # P
                pl.BlockSpec((1, Np, tn), lambda si, j, b: (b, 0, j)),    # Gexp
                pl.BlockSpec((1, tn), lambda si, j, b: (0, j)),           # bias
            ],
            out_specs=pl.BlockSpec((1, ts, tn), lambda si, j, b: (b, si, j)),
        ),
        compiler_params=pltpu.CompilerParams(
            dimension_semantics=("parallel", "parallel", "arbitrary"),
            vmem_limit_bytes=vmem_limit,
        ),
    )(partials, gexp, params["b_pad"])

    return out[:, :S, :D]


# ----------------------------------------------------------------------------
# Full forward: dict of samples + graphs -> dict of predictions
# ----------------------------------------------------------------------------
def forward(samples, graphs, variables, weights, bias):
    """samples: OrderedDict[name -> array of shape sample_shape + node_shape]
       graphs:  [*batch_shape, N, N]
       returns OrderedDict[name -> array of shape
                           sample_shape + batch_shape + node_shape]"""
    output_shape, _masks = build_variable_masks(variables)
    node_mask = stacked_mask_matrix(variables, output_shape)
    params = prepare_linear_params(weights, bias, node_mask)

    first_name = next(iter(variables))
    first_shape = variables[first_name]
    sample_shape = samples[first_name].shape[: samples[first_name].ndim
                                             - len(first_shape)]
    flat_parts = []
    for name, shape in variables.items():
        numel = int(np.prod(shape))
        flat_parts.append(samples[name].reshape(sample_shape + (numel,)))
    x = jnp.concatenate(flat_parts, axis=-1)            # sample_shape + (D,)

    batch_shape = graphs.shape[:-2]
    N = graphs.shape[-1]
    S = int(np.prod(sample_shape)) if sample_shape else 1
    B = int(np.prod(batch_shape)) if batch_shape else 1

    x_flat = x.reshape(S, output_shape)
    g_flat = graphs.reshape(B, N, N)

    out = linear_functional_relationships_pallas(x_flat, g_flat, params)  # [B,S,D]

    # Reorder to sample_shape + batch_shape + (D,)
    out = jnp.moveaxis(out, 0, 1)                        # [S, B, D]
    out = out.reshape(sample_shape + batch_shape + (output_shape,))

    preds = OrderedDict()
    last_idx = 0
    for name, shape in variables.items():
        numel = int(np.prod(shape))
        sl = out[..., last_idx:last_idx + numel]
        preds[name] = sl.reshape(sample_shape + batch_shape + tuple(shape))
        last_idx += numel
    return preds


# ----------------------------------------------------------------------------
# Pure-JAX reference (operands rounded to bf16 to match MXU inputs)
# ----------------------------------------------------------------------------
def reference_out(x_flat, graphs, weights, bias, node_mask):
    xb = x_flat.astype(jnp.bfloat16).astype(jnp.float32)
    wb = weights.astype(jnp.bfloat16).astype(jnp.float32)
    eg = jnp.einsum("ni,bnm,mj->bij", node_mask, graphs, node_mask)
    wg = eg * wb[None, :, :]
    return jnp.einsum("si,bij->bsj", xb, wg,
                      precision=jax.lax.Precision.HIGHEST) + bias[None, None, :]


if __name__ == "__main__":
    # Variables (node shapes), as in the module's __init__.
    variables = OrderedDict([
        ("x0", (16,)),
        ("x1", (8, 2)),
        ("x2", (32,)),
    ])
    output_shape, variable_masks = build_variable_masks(variables)   # D = 64
    node_mask = stacked_mask_matrix(variables, output_shape)
    num_nodes = len(variables)

    # Deterministic parameter init (synthetic, not a checkpoint load).
    kw, kb = jax.random.split(jax.random.PRNGKey(42))
    weights = jax.random.normal(kw, (output_shape, output_shape),
                                dtype=jnp.float32) * 0.1
    bias = jax.random.normal(kb, (output_shape,), dtype=jnp.float32) * 0.01

    # Example inputs: sample_shape = (8,), graph batch_shape = (2,)
    key = jax.random.PRNGKey(0)
    ks = jax.random.split(key, num_nodes + 1)
    sample_shape = (8,)
    samples = OrderedDict()
    for i, (name, shape) in enumerate(variables.items()):
        samples[name] = jax.random.normal(ks[i], sample_shape + tuple(shape),
                                          dtype=jnp.float32)
    # Random adjacency (0/1, no self-loops).
    g_logits = jax.random.uniform(ks[-1], (2, num_nodes, num_nodes))
    graphs = (g_logits > 0.5).astype(jnp.float32)
    graphs = graphs * (1.0 - jnp.eye(num_nodes))

    preds = forward(samples, graphs, variables, weights, bias)
    preds = jax.tree_util.tree_map(jax.block_until_ready, preds)

    # Check shapes: sample_shape + batch_shape + node_shape
    for name, shape in variables.items():
        expected = sample_shape + graphs.shape[:-2] + tuple(shape)
        assert preds[name].shape == expected, (name, preds[name].shape, expected)

    # Numerical check against pure-JAX reference (bf16-rounded operands,
    # f32 accumulation, so tolerances stay tight).
    x_flat = jnp.concatenate(
        [samples[n].reshape(sample_shape + (int(np.prod(s)),))
         for n, s in variables.items()], axis=-1).reshape(-1, output_shape)
    ref = reference_out(x_flat, graphs, weights, bias, node_mask)  # [B, S, D]
    got = jnp.concatenate(
        [preds[n].reshape(sample_shape + graphs.shape[:-2] + (-1,))
         for n in variables], axis=-1)                              # [S, B, D]
    got = jnp.moveaxis(got, 1, 0)                                   # [B, S, D]
    np.testing.assert_allclose(np.asarray(got), np.asarray(ref),
                               rtol=1e-3, atol=1e-3)

    print("KERNEL_OK")
</pallas_src>

<mosaic_0001>
module attributes {stable_mosaic.version = 11 : i64} {
  func.func @_node_partials_kernel(%arg0: i32, %arg1: i32, %arg2: i32, %arg3: memref<8x128xbf16, #tpu.memory_space<vmem>>, %arg4: memref<128x128xbf16, #tpu.memory_space<vmem>>, %arg5: memref<8x128xbf16, #tpu.memory_space<vmem>>, %arg6: memref<8x8x128xf32, #tpu.memory_space<vmem>>, %arg7: memref<64x128xbf16, #tpu.memory_space<vmem>>, %arg8: memref<64x128xf32, #tpu.memory_space<vmem>>) attributes {dimension_semantics = [#tpu.dimension_semantics<parallel>, #tpu.dimension_semantics<parallel>, #tpu.dimension_semantics<arbitrary>], iteration_bounds = array<i64: 1, 1, 1>, scalar_prefetch = 0 : i64, scratch_operands = 2 : i64, tpu.core_type = #tpu.core_type<tc>, window_params = [{transform_indices = @transform_0, window_bounds = array<i64: 8, 128>}, {transform_indices = @transform_1, window_bounds = array<i64: 128, 128>}, {transform_indices = @transform_2, window_bounds = array<i64: 8, 128>}, {transform_indices = @transform_3, window_bounds = array<i64: 8, 8, 128>}]} {
    %c0_i32 = arith.constant 0 : i32
    %0 = arith.cmpi eq, %arg2, %c0_i32 : i32
    %1 = arith.extui %0 : i1 to i32
    %c0_i32_0 = arith.constant 0 : i32
    %2 = arith.cmpi ne, %1, %c0_i32_0 : i32
    scf.if %2 {
      %cst_30 = arith.constant 0.000000e+00 : f32
      %45 = vector.broadcast %cst_30 : f32 to vector<64x128xf32>
      %c0_31 = arith.constant 0 : index
      %c0_32 = arith.constant 0 : index
      %46 = vector.load %arg8[%c0_31, %c0_32] : memref<64x128xf32, #tpu.memory_space<vmem>>, vector<64x128xf32>
      tpu.vector_store %arg8[%c0_31, %c0_32], %45 {strides = array<i32>} : memref<64x128xf32, #tpu.memory_space<vmem>>, vector<64x128xf32>,
    } else {
    }
    %c0 = arith.constant 0 : index
    %c0_1 = arith.constant 0 : index
    %3 = vector.load %arg3[%c0, %c0_1] : memref<8x128xbf16, #tpu.memory_space<vmem>>, vector<8x128xbf16>
    %c0_2 = arith.constant 0 : index
    %c0_3 = arith.constant 0 : index
    %4 = vector.load %arg5[%c0_2, %c0_3] : memref<8x128xbf16, #tpu.memory_space<vmem>>, vector<1x128xbf16>
    %5 = vector.broadcast %4 : vector<1x128xbf16> to vector<8x128xbf16>
    %6 = arith.mulf %3, %5 : vector<8x128xbf16>
    %c0_4 = arith.constant 0 : index
    %c0_5 = arith.constant 0 : index
    %7 = vector.load %arg7[%c0_4, %c0_5] : memref<64x128xbf16, #tpu.memory_space<vmem>>, vector<8x128xbf16>
    tpu.vector_store %arg7[%c0_4, %c0_5], %6 {strides = array<i32>} : memref<64x128xbf16, #tpu.memory_space<vmem>>, vector<8x128xbf16>,
    %c1 = arith.constant 1 : index
    %c0_6 = arith.constant 0 : index
    %8 = vector.load %arg5[%c1, %c0_6] : memref<8x128xbf16, #tpu.memory_space<vmem>>, vector<1x128xbf16>
    %9 = vector.broadcast %8 : vector<1x128xbf16> to vector<8x128xbf16>
    %10 = arith.mulf %3, %9 : vector<8x128xbf16>
    %c8 = arith.constant 8 : index
    %c0_7 = arith.constant 0 : index
    %11 = vector.load %arg7[%c8, %c0_7] : memref<64x128xbf16, #tpu.memory_space<vmem>>, vector<8x128xbf16>
    tpu.vector_store %arg7[%c8, %c0_7], %10 {strides = array<i32>} : memref<64x128xbf16, #tpu.memory_space<vmem>>, vector<8x128xbf16>,
    %c2 = arith.constant 2 : index
    %c0_8 = arith.constant 0 : index
    %12 = vector.load %arg5[%c2, %c0_8] : memref<8x128xbf16, #tpu.memory_space<vmem>>, vector<1x128xbf16>
    %13 = vector.broadcast %12 : vector<1x128xbf16> to vector<8x128xbf16>
    %14 = arith.mulf %3, %13 : vector<8x128xbf16>
    %c16 = arith.constant 16 : index
    %c0_9 = arith.constant 0 : index
    %15 = vector.load %arg7[%c16, %c0_9] : memref<64x128xbf16, #tpu.memory_space<vmem>>, vector<8x128xbf16>
    tpu.vector_store %arg7[%c16, %c0_9], %14 {strides = array<i32>} : memref<64x128xbf16, #tpu.memory_space<vmem>>, vector<8x128xbf16>,
    %c3 = arith.constant 3 : index
    %c0_10 = arith.constant 0 : index
    %16 = vector.load %arg5[%c3, %c0_10] : memref<8x128xbf16, #tpu.memory_space<vmem>>, vector<1x128xbf16>
    %17 = vector.broadcast %16 : vector<1x128xbf16> to vector<8x128xbf16>
    %18 = arith.mulf %3, %17 : vector<8x128xbf16>
    %c24 = arith.constant 24 : index
    %c0_11 = arith.constant 0 : index
    %19 = vector.load %arg7[%c24, %c0_11] : memref<64x128xbf16, #tpu.memory_space<vmem>>, vector<8x128xbf16>
    tpu.vector_store %arg7[%c24, %c0_11], %18 {strides = array<i32>} : memref<64x128xbf16, #tpu.memory_space<vmem>>, vector<8x128xbf16>,
    %c4 = arith.constant 4 : index
    %c0_12 = arith.constant 0 : index
    %20 = vector.load %arg5[%c4, %c0_12] : memref<8x128xbf16, #tpu.memory_space<vmem>>, vector<1x128xbf16>
    %21 = vector.broadcast %20 : vector<1x128xbf16> to vector<8x128xbf16>
    %22 = arith.mulf %3, %21 : vector<8x128xbf16>
    %c32 = arith.constant 32 : index
    %c0_13 = arith.constant 0 : index
    %23 = vector.load %arg7[%c32, %c0_13] : memref<64x128xbf16, #tpu.memory_space<vmem>>, vector<8x128xbf16>
    tpu.vector_store %arg7[%c32, %c0_13], %22 {strides = array<i32>} : memref<64x128xbf16, #tpu.memory_space<vmem>>, vector<8x128xbf16>,
    %c5 = arith.constant 5 : index
    %c0_14 = arith.constant 0 : index
    %24 = vector.load %arg5[%c5, %c0_14] : memref<8x128xbf16, #tpu.memory_space<vmem>>, vector<1x128xbf16>
    %25 = vector.broadcast %24 : vector<1x128xbf16> to vector<8x128xbf16>
    %26 = arith.mulf %3, %25 : vector<8x128xbf16>
    %c40 = arith.constant 40 : index
    %c0_15 = arith.constant 0 : index
    %27 = vector.load %arg7[%c40, %c0_15] : memref<64x128xbf16, #tpu.memory_space<vmem>>, vector<8x128xbf16>
    tpu.vector_store %arg7[%c40, %c0_15], %26 {strides = array<i32>} : memref<64x128xbf16, #tpu.memory_space<vmem>>, vector<8x128xbf16>,
    %c6 = arith.constant 6 : index
    %c0_16 = arith.constant 0 : index
    %28 = vector.load %arg5[%c6, %c0_16] : memref<8x128xbf16, #tpu.memory_space<vmem>>, vector<1x128xbf16>
    %29 = vector.broadcast %28 : vector<1x128xbf16> to vector<8x128xbf16>
    %30 = arith.mulf %3, %29 : vector<8x128xbf16>
    %c48 = arith.constant 48 : index
    %c0_17 = arith.constant 0 : index
    %31 = vector.load %arg7[%c48, %c0_17] : memref<64x128xbf16, #tpu.memory_space<vmem>>, vector<8x128xbf16>
    tpu.vector_store %arg7[%c48, %c0_17], %30 {strides = array<i32>} : memref<64x128xbf16, #tpu.memory_space<vmem>>, vector<8x128xbf16>,
    %c7 = arith.constant 7 : index
    %c0_18 = arith.constant 0 : index
    %32 = vector.load %arg5[%c7, %c0_18] : memref<8x128xbf16, #tpu.memory_space<vmem>>, vector<1x128xbf16>
    %33 = vector.broadcast %32 : vector<1x128xbf16> to vector<8x128xbf16>
    %34 = arith.mulf %3, %33 : vector<8x128xbf16>
    %c56 = arith.constant 56 : index
    %c0_19 = arith.constant 0 : index
    %35 = vector.load %arg7[%c56, %c0_19] : memref<64x128xbf16, #tpu.memory_space<vmem>>, vector<8x128xbf16>
    tpu.vector_store %arg7[%c56, %c0_19], %34 {strides = array<i32>} : memref<64x128xbf16, #tpu.memory_space<vmem>>, vector<8x128xbf16>,
    %c0_20 = arith.constant 0 : index
    %c0_21 = arith.constant 0 : index
    %36 = vector.load %arg8[%c0_20, %c0_21] : memref<64x128xf32, #tpu.memory_space<vmem>>, vector<64x128xf32>
    %c0_22 = arith.constant 0 : index
    %c0_23 = arith.constant 0 : index
    %37 = vector.load %arg7[%c0_22, %c0_23] : memref<64x128xbf16, #tpu.memory_space<vmem>>, vector<64x128xbf16>
    %c0_24 = arith.constant 0 : index
    %c0_25 = arith.constant 0 : index
    %38 = vector.load %arg4[%c0_24, %c0_25] : memref<128x128xbf16, #tpu.memory_space<vmem>>, vector<128x128xbf16>
    %cst = arith.constant dense<0.000000e+00> : vector<64x128xf32>
    %39 = tpu.matmul %37, %38, %cst {dimension_numbers = #tpu.dot_dimension_numbers<[1], [0], [0], [1], [0, 0, 1, 1], [], []>} : vector<64x128xbf16>, vector<128x128xbf16>, vector<64x128xf32> -> vector<64x128xf32>
    %40 = arith.addf %36, %39 : vector<64x128xf32>
    %c0_26 = arith.constant 0 : index
    %c0_27 = arith.constant 0 : index
    %41 = vector.load %arg8[%c0_26, %c0_27] : memref<64x128xf32, #tpu.memory_space<vmem>>, vector<64x128xf32>
    tpu.vector_store %arg8[%c0_26, %c0_27], %40 {strides = array<i32>} : memref<64x128xf32, #tpu.memory_space<vmem>>, vector<64x128xf32>,
    %c0_i32_28 = arith.constant 0 : i32
    %42 = arith.cmpi eq, %arg2, %c0_i32_28 : i32
    %43 = arith.extui %42 : i1 to i32
    %c0_i32_29 = arith.constant 0 : i32
    %44 = arith.cmpi ne, %43, %c0_i32_29 : i32
    scf.if %44 {
      %c0_30 = arith.constant 0 : index
      %c0_31 = arith.constant 0 : index
      %45 = vector.load %arg8[%c0_30, %c0_31] : memref<64x128xf32, #tpu.memory_space<vmem>>, vector<8x128xf32>
      %c0_32 = arith.constant 0 : index
      %c0_33 = arith.constant 0 : index
      %c0_34 = arith.constant 0 : index
      %46 = vector.load %arg6[%c0_32, %c0_33, %c0_34] : memref<8x8x128xf32, #tpu.memory_space<vmem>>, vector<1x8x128xf32>
      %47 = vector.shape_cast %46 : vector<1x8x128xf32> to vector<8x128xf32>
      %48 = vector.shape_cast %45 : vector<8x128xf32> to vector<1x8x128xf32>
      tpu.vector_store %arg6[%c0_32, %c0_33, %c0_34], %48 {strides = array<i32>} : memref<8x8x128xf32, #tpu.memory_space<vmem>>, vector<1x8x128xf32>,
      %c8_35 = arith.constant 8 : index
      %c0_36 = arith.constant 0 : index
      %49 = vector.load %arg8[%c8_35, %c0_36] : memref<64x128xf32, #tpu.memory_space<vmem>>, vector<8x128xf32>
      %c1_37 = arith.constant 1 : index
      %c0_38 = arith.constant 0 : index
      %c0_39 = arith.constant 0 : index
      %50 = vector.load %arg6[%c1_37, %c0_38, %c0_39] : memref<8x8x128xf32, #tpu.memory_space<vmem>>, vector<1x8x128xf32>
      %51 = vector.shape_cast %50 : vector<1x8x128xf32> to vector<8x128xf32>
      %52 = vector.shape_cast %49 : vector<8x128xf32> to vector<1x8x128xf32>
      tpu.vector_store %arg6[%c1_37, %c0_38, %c0_39], %52 {strides = array<i32>} : memref<8x8x128xf32, #tpu.memory_space<vmem>>, vector<1x8x128xf32>,
      %c16_40 = arith.constant 16 : index
      %c0_41 = arith.constant 0 : index
      %53 = vector.load %arg8[%c16_40, %c0_41] : memref<64x128xf32, #tpu.memory_space<vmem>>, vector<8x128xf32>
      %c2_42 = arith.constant 2 : index
      %c0_43 = arith.constant 0 : index
      %c0_44 = arith.constant 0 : index
      %54 = vector.load %arg6[%c2_42, %c0_43, %c0_44] : memref<8x8x128xf32, #tpu.memory_space<vmem>>, vector<1x8x128xf32>
      %55 = vector.shape_cast %54 : vector<1x8x128xf32> to vector<8x128xf32>
      %56 = vector.shape_cast %53 : vector<8x128xf32> to vector<1x8x128xf32>
      tpu.vector_store %arg6[%c2_42, %c0_43, %c0_44], %56 {strides = array<i32>} : memref<8x8x128xf32, #tpu.memory_space<vmem>>, vector<1x8x128xf32>,
      %c24_45 = arith.constant 24 : index
      %c0_46 = arith.constant 0 : index
      %57 = vector.load %arg8[%c24_45, %c0_46] : memref<64x128xf32, #tpu.memory_space<vmem>>, vector<8x128xf32>
      %c3_47 = arith.constant 3 : index
      %c0_48 = arith.constant 0 : index
      %c0_49 = arith.constant 0 : index
      %58 = vector.load %arg6[%c3_47, %c0_48, %c0_49] : memref<8x8x128xf32, #tpu.memory_space<vmem>>, vector<1x8x128xf32>
      %59 = vector.shape_cast %58 : vector<1x8x128xf32> to vector<8x128xf32>
      %60 = vector.shape_cast %57 : vector<8x128xf32> to vector<1x8x128xf32>
      tpu.vector_store %arg6[%c3_47, %c0_48, %c0_49], %60 {strides = array<i32>} : memref<8x8x128xf32, #tpu.memory_space<vmem>>, vector<1x8x128xf32>,
      %c32_50 = arith.constant 32 : index
      %c0_51 = arith.constant 0 : index
      %61 = vector.load %arg8[%c32_50, %c0_51] : memref<64x128xf32, #tpu.memory_space<vmem>>, vector<8x128xf32>
      %c4_52 = arith.constant 4 : index
      %c0_53 = arith.constant 0 : index
      %c0_54 = arith.constant 0 : index
      %62 = vector.load %arg6[%c4_52, %c0_53, %c0_54] : memref<8x8x128xf32, #tpu.memory_space<vmem>>, vector<1x8x128xf32>
      %63 = vector.shape_cast %62 : vector<1x8x128xf32> to vector<8x128xf32>
      %64 = vector.shape_cast %61 : vector<8x128xf32> to vector<1x8x128xf32>
      tpu.vector_store %arg6[%c4_52, %c0_53, %c0_54], %64 {strides = array<i32>} : memref<8x8x128xf32, #tpu.memory_space<vmem>>, vector<1x8x128xf32>,
      %c40_55 = arith.constant 40 : index
      %c0_56 = arith.constant 0 : index
      %65 = vector.load %arg8[%c40_55, %c0_56] : memref<64x128xf32, #tpu.memory_space<vmem>>, vector<8x128xf32>
      %c5_57 = arith.constant 5 : index
      %c0_58 = arith.constant 0 : index
      %c0_59 = arith.constant 0 : index
      %66 = vector.load %arg6[%c5_57, %c0_58, %c0_59] : memref<8x8x128xf32, #tpu.memory_space<vmem>>, vector<1x8x128xf32>
      %67 = vector.shape_cast %66 : vector<1x8x128xf32> to vector<8x128xf32>
      %68 = vector.shape_cast %65 : vector<8x128xf32> to vector<1x8x128xf32>
      tpu.vector_store %arg6[%c5_57, %c0_58, %c0_59], %68 {strides = array<i32>} : memref<8x8x128xf32, #tpu.memory_space<vmem>>, vector<1x8x128xf32>,
      %c48_60 = arith.constant 48 : index
      %c0_61 = arith.constant 0 : index
      %69 = vector.load %arg8[%c48_60, %c0_61] : memref<64x128xf32, #tpu.memory_space<vmem>>, vector<8x128xf32>
      %c6_62 = arith.constant 6 : index
      %c0_63 = arith.constant 0 : index
      %c0_64 = arith.constant 0 : index
      %70 = vector.load %arg6[%c6_62, %c0_63, %c0_64] : memref<8x8x128xf32, #tpu.memory_space<vmem>>, vector<1x8x128xf32>
      %71 = vector.shape_cast %70 : vector<1x8x128xf32> to vector<8x128xf32>
      %72 = vector.shape_cast %69 : vector<8x128xf32> to vector<1x8x128xf32>
      tpu.vector_store %arg6[%c6_62, %c0_63, %c0_64], %72 {strides = array<i32>} : memref<8x8x128xf32, #tpu.memory_space<vmem>>, vector<1x8x128xf32>,
      %c56_65 = arith.constant 56 : index
      %c0_66 = arith.constant 0 : index
      %73 = vector.load %arg8[%c56_65, %c0_66] : memref<64x128xf32, #tpu.memory_space<vmem>>, vector<8x128xf32>
      %c7_67 = arith.constant 7 : index
      %c0_68 = arith.constant 0 : index
      %c0_69 = arith.constant 0 : index
      %74 = vector.load %arg6[%c7_67, %c0_68, %c0_69] : memref<8x8x128xf32, #tpu.memory_space<vmem>>, vector<1x8x128xf32>
      %75 = vector.shape_cast %74 : vector<1x8x128xf32> to vector<8x128xf32>
      %76 = vector.shape_cast %73 : vector<8x128xf32> to vector<1x8x128xf32>
      tpu.vector_store %arg6[%c7_67, %c0_68, %c0_69], %76 {strides = array<i32>} : memref<8x8x128xf32, #tpu.memory_space<vmem>>, vector<1x8x128xf32>,
    } else {
    }
    return
  }
  func.func @transform_0(%arg0: i32, %arg1: i32, %arg2: i32) -> (i32, i32) {
    %c0_i32 = arith.constant 0 : i32
    return %arg0, %arg2 : i32, i32
  }
  func.func @transform_1(%arg0: i32, %arg1: i32, %arg2: i32) -> (i32, i32) {
    %c0_i32 = arith.constant 0 : i32
    return %arg2, %arg1 : i32, i32
  }
  func.func @transform_2(%arg0: i32, %arg1: i32, %arg2: i32) -> (i32, i32) {
    %c0_i32 = arith.constant 0 : i32
    %c0_i32_0 = arith.constant 0 : i32
    return %c0_i32, %arg2 : i32, i32
  }
  func.func @transform_3(%arg0: i32, %arg1: i32, %arg2: i32) -> (i32, i32, i32) {
    %c0_i32 = arith.constant 0 : i32
    %c0_i32_0 = arith.constant 0 : i32
    return %c0_i32, %arg0, %arg1 : i32, i32, i32
  }
}

</mosaic_0001>

<llo_original>
// kernel: tpu_custom_call.1
$region0: #{tpu_custom_call.1}
  #allocation0 [shape = 'u32[]', space=smem, size = 0x4, offset = 0x4, fixed_abs, tag = 'smem constant byte address 0x4 - core index']
  #allocation1 [shape = 'u32[144,128]{1,0:T(1,128)}', space=vmem, size = 0x12000, scoped, tag = 'internal scratch']
  #allocation2 [shape = 'bf16[64,128]{1,0:T(16,128)(2,1)}', space=vmem, size = 0x4000, scoped, tag = 'scratch operand']
  #allocation3 [shape = 'f32[64,128]{1,0:T(8,128)}', space=vmem, size = 0x8000, scoped, tag = 'scratch operand']
  %s0 = inlined_call_operand.hbm [shape: bf16[8,128], index: 0, kind: input, shape index: {}]
  %s1 = inlined_call_operand.hbm [shape: bf16[128,128], index: 1, kind: input, shape index: {}]
  %s2 = inlined_call_operand.vmem [shape: bf16[8,128], index: 2, kind: input, shape index: {}]
  %s3 = inlined_call_operand.hbm [shape: f32[8,8,128], index: 3, kind: output, shape index: {}]
  %s4 = sld [smem:[#allocation0]]
  $region38: #{tpu_custom_call.1} parent=0
    _
  %s6 = ssub.s32 1, %s4
  %s7 = scalar_select 0, %s6, %s4
  $region1: #{tpu_custom_call.1} parent=0
    #allocation4 [shape = 'u8[2048]{0}', space=vmem, size = 0x800, scoped, tag = 'input window, operand 0, single buffered']
    #allocation5 [shape = 's32[1]{0}', space=sflag, size = 0x4, scoped, tag = 'scoped memory for tpu_custom_call.1']
    #allocation6 [shape = 's32[1]{0}', space=sflag, size = 0x4, scoped, tag = 'scoped memory for tpu_custom_call.1']
    #allocation7 [shape = 'u8[32768]{0}', space=vmem, size = 0x8000, scoped, tag = 'input window, operand 1, single buffered']
    #allocation8 [shape = 's32[1]{0}', space=sflag, size = 0x4, scoped, tag = 'scoped memory for tpu_custom_call.1']
    #allocation9 [shape = 'u8[32768]{0}', space=vmem, size = 0x8000, scoped, tag = 'output window, operand 0, single buffered']
    %8 = vsyncpa [#allocation5], 0
    %9 = vsyncpa [#allocation8], 0
    %10 = vsyncpa [#allocation6], 0
    // Predicated region
    $region2: #{tpu_custom_call.1} parent=1 // pred_check
      _
    $region3: #{tpu_custom_call.1} parent=1 // pred_check_branch
      %12 = sbr.rel (0) target = $region5
    $region4: #{tpu_custom_call.1} parent=1 // pred_region
      %s14 = ssub.s32 64, 64
      %15 = vsyncadd [#allocation5], %s14
      %s17 = sshll.u32 [#allocation4], 4
      %s18 = int_to_ptr.vmem [resolvable:$true] %s17
      %20 = dma.hbm_to_vmem [thread:$0]  %s0, 64, %s18, [#allocation5]
    $region5: #{tpu_custom_call.1} parent=1 // pred_fallthru
      _
    // Predicated region
    $region6: #{tpu_custom_call.1} parent=1 // pred_check
      _
    $region7: #{tpu_custom_call.1} parent=1 // pred_check_branch
      %22 = sbr.rel (0) target = $region9
    $region8: #{tpu_custom_call.1} parent=1 // pred_region
      %s24 = ssub.s32 1024, 1024
      %25 = vsyncadd [#allocation8], %s24
      %s26 = sshll.u32 [#allocation7], 4
      %s27 = int_to_ptr.vmem [resolvable:$true] %s26
      %32 = dma.hbm_to_vmem [thread:$0]  %s1, 1024, %s27, [#allocation8], 64, 64, 4
    $region9: #{tpu_custom_call.1} parent=1 // pred_fallthru
      _
    // Predicated region
    $region10: #{tpu_custom_call.1} parent=1 // pred_check
      _
    $region11: #{tpu_custom_call.1} parent=1 // pred_check_branch
      %34 = sbr.rel (0) target = $region13
    $region12: #{tpu_custom_call.1} parent=1 // pred_region
      _
    $region13: #{tpu_custom_call.1} parent=1 // pred_fallthru
      _
    // Predicated region
    $region14: #{tpu_custom_call.1} parent=1 // pred_check
      _
    $region15: #{tpu_custom_call.1} parent=1 // pred_check_branch
      %36 = sbr.rel (0) target = $region17
    $region16: #{tpu_custom_call.1} parent=1 // pred_region
      %37 = dma.done [#allocation5], 64
    $region17: #{tpu_custom_call.1} parent=1 // pred_fallthru
      _
    // Predicated region
    $region18: #{tpu_custom_call.1} parent=1 // pred_check
      _
    $region19: #{tpu_custom_call.1} parent=1 // pred_check_branch
      %39 = sbr.rel (0) target = $region21
    $region20: #{tpu_custom_call.1} parent=1 // pred_region
      %40 = dma.done [#allocation8], 1024
    $region21: #{tpu_custom_call.1} parent=1 // pred_fallthru
      _
    %p42 = scmp.eq.s32.totalorder 0, 0
    // Predicated region
    $region22: #{tpu_custom_call.1} parent=1 // pred_check
      %p43 = pneg %p42
    $region23: #{tpu_custom_call.1} parent=1 // pred_check_branch
      %45 = sbr.rel (%p43) target = $region25
    $region24: #{tpu_custom_call.1} parent=1 // pred_region
      %46 = vst [vmem:[#allocation3] sm:$0xff] 0.0
      %47 = vst [vmem:[#allocation3 + $0x8] sm:$0xff] 0.0
      %48 = vst [vmem:[#allocation3 + $0x10] sm:$0xff] 0.0
      %49 = vst [vmem:[#allocation3 + $0x18] sm:$0xff] 0.0
      %50 = vst [vmem:[#allocation3 + $0x20] sm:$0xff] 0.0
      %51 = vst [vmem:[#allocation3 + $0x28] sm:$0xff] 0.0
      %52 = vst [vmem:[#allocation3 + $0x30] sm:$0xff] 0.0
      %53 = vst [vmem:[#allocation3 + $0x38] sm:$0xff] 0.0
    $region25: #{tpu_custom_call.1} parent=1 // pred_fallthru
      _
    %v54 = vld [vmem:[#allocation4] sm:$0xf]
    %v55 = vld [vmem:[%s2] sm:$0x1]
    %v57 = vpack.i.b16 %v55, %v55
    %v59 = vlaneseq
    %v60 = vshrl.u32 %v59, 7
    %v61 = vsub.s32 0, %v60
    %v62 = vrot.slane %v57, %v61
    %v63 = vmul.bf16 %v54, %v62
    %64 = vst [vmem:[#allocation2] sm:$0xf] %v63
    %v65 = vld [vmem:[%s2] sm:$0x1]
    %v67 = vshrl.u32 %v65, 16
    %v68 = vpack.i.b16 %v67, %v67
    %v70 = vlaneseq
    %v71 = vshrl.u32 %v70, 7
    %v72 = vsub.s32 0, %v71
    %v73 = vrot.slane %v68, %v72
    %v74 = vmul.bf16 %v54, %v73
    %v76 = vunpack.c.l.b16 %v74
    %v77 = vpack.c.b16 %v76, %v76
    %79 = vst [vmem:[#allocation2] sm:$0xf0] %v77
    %v80 = vld [vmem:[%s2] sm:$0x2]
    %v82 = vpack.i.b16 %v80, %v80
    %v84 = vlaneseq
    %v85 = vshrl.u32 %v84, 7
    %v86 = vsub.s32 1, %v85
    %v87 = vrot.slane %v82, %v86
    %v88 = vmul.bf16 %v54, %v87
    %89 = vst [vmem:[#allocation2 + $0x8] sm:$0xf] %v88
    %v90 = vld [vmem:[%s2] sm:$0x2]
    %v92 = vshrl.u32 %v90, 16
    %v93 = vpack.i.b16 %v92, %v92
    %v95 = vlaneseq
    %v96 = vshrl.u32 %v95, 7
    %v97 = vsub.s32 1, %v96
    %v98 = vrot.slane %v93, %v97
    %v99 = vmul.bf16 %v54, %v98
    %v101 = vunpack.c.l.b16 %v99
    %v102 = vpack.c.b16 %v101, %v101
    %104 = vst [vmem:[#allocation2 + $0x8] sm:$0xf0] %v102
    %v105 = vld [vmem:[%s2] sm:$0x4]
    %v107 = vpack.i.b16 %v105, %v105
    %v109 = vlaneseq
    %v110 = vshrl.u32 %v109, 7
    %v111 = vsub.s32 2, %v110
    %v112 = vrot.slane %v107, %v111
    %v113 = vmul.bf16 %v54, %v112
    %114 = vst [vmem:[#allocation2 + $0x10] sm:$0xf] %v113
    %v115 = vld [vmem:[%s2] sm:$0x4]
    %v117 = vshrl.u32 %v115, 16
    %v118 = vpack.i.b16 %v117, %v117
    %v120 = vlaneseq
    %v121 = vshrl.u32 %v120, 7
    %v122 = vsub.s32 2, %v121
    %v123 = vrot.slane %v118, %v122
    %v124 = vmul.bf16 %v54, %v123
    %v126 = vunpack.c.l.b16 %v124
    %v127 = vpack.c.b16 %v126, %v126
    %129 = vst [vmem:[#allocation2 + $0x10] sm:$0xf0] %v127
    %v130 = vld [vmem:[%s2] sm:$0x8]
    %v132 = vpack.i.b16 %v130, %v130
    %v134 = vlaneseq
    %v135 = vshrl.u32 %v134, 7
    %v136 = vsub.s32 3, %v135
    %v137 = vrot.slane %v132, %v136
    %v138 = vmul.bf16 %v54, %v137
    %139 = vst [vmem:[#allocation2 + $0x18] sm:$0xf] %v138
    %v140 = vld [vmem:[%s2] sm:$0x8]
    %v142 = vshrl.u32 %v140, 16
    %v143 = vpack.i.b16 %v142, %v142
    %v145 = vlaneseq
    %v146 = vshrl.u32 %v145, 7
    %v147 = vsub.s32 3, %v146
    %v148 = vrot.slane %v143, %v147
    %v149 = vmul.bf16 %v54, %v148
    %v151 = vunpack.c.l.b16 %v149
    %v152 = vpack.c.b16 %v151, %v151
    %154 = vst [vmem:[#allocation2 + $0x18] sm:$0xf0] %v152
    %v155 = vld [vmem:[#allocation3] sm:$0xff]
    %v156 = vld [vmem:[#allocation3 + $0x8] sm:$0xff]
    %v157 = vld [vmem:[#allocation3 + $0x10] sm:$0xff]
    %v158 = vld [vmem:[#allocation3 + $0x18] sm:$0xff]
    %v159 = vld [vmem:[#allocation3 + $0x20] sm:$0xff]
    %v160 = vld [vmem:[#allocation3 + $0x28] sm:$0xff]
    %v161 = vld [vmem:[#allocation3 + $0x30] sm:$0xff]
    %v162 = vld [vmem:[#allocation3 + $0x38] sm:$0xff]
    %v163 = vld [vmem:[#allocation2] sm:$0xff]
    %v164 = vld [vmem:[#allocation2 + $0x8] sm:$0xff]
    %v165 = vld [vmem:[#allocation2 + $0x10] sm:$0xff]
    %v166 = vld [vmem:[#allocation2 + $0x18] sm:$0xff]
    %v167 = vld [vmem:[#allocation7] sm:$0xf]
    %v168 = vld [vmem:[#allocation7 + $0x4] sm:$0xf]
    %v169 = vld [vmem:[#allocation7 + $0x8] sm:$0xf]
    %v170 = vld [vmem:[#allocation7 + $0xc] sm:$0xf]
    %v171 = vld [vmem:[#allocation7 + $0x10] sm:$0xf]
    %v172 = vld [vmem:[#allocation7 + $0x14] sm:$0xf]
    %v173 = vld [vmem:[#allocation7 + $0x18] sm:$0xf]
    %v174 = vld [vmem:[#allocation7 + $0x1c] sm:$0xf]
    %v175 = vld [vmem:[#allocation7 + $0x20] sm:$0xf]
    %v176 = vld [vmem:[#allocation7 + $0x24] sm:$0xf]
    %v177 = vld [vmem:[#allocation7 + $0x28] sm:$0xf]
    %v178 = vld [vmem:[#allocation7 + $0x2c] sm:$0xf]
    %v179 = vld [vmem:[#allocation7 + $0x30] sm:$0xf]
    %v180 = vld [vmem:[#allocation7 + $0x34] sm:$0xf]
    %v181 = vld [vmem:[#allocation7 + $0x38] sm:$0xf]
    %v182 = vld [vmem:[#allocation7 + $0x3c] sm:$0xf]
    %v199 = vunpack.c.l.b16 %v167
    %v200 = vunpack.c.l.b16 %v168
    %v201 = vunpack.c.l.b16 %v169
    %v202 = vunpack.c.l.b16 %v170
    %v203 = vunpack.c.l.b16 %v171
    %v204 = vunpack.c.l.b16 %v172
    %v205 = vunpack.c.l.b16 %v173
    %v206 = vunpack.c.l.b16 %v174
    %v207 = vunpack.c.l.b16 %v175
    %v208 = vunpack.c.l.b16 %v176
    %v209 = vunpack.c.l.b16 %v177
    %v210 = vunpack.c.l.b16 %v178
    %v211 = vunpack.c.l.b16 %v179
    %v212 = vunpack.c.l.b16 %v180
    %v213 = vunpack.c.l.b16 %v181
    %v214 = vunpack.c.l.b16 %v182
    %v215 = vpack.c.b16 %v200, %v199
    %v216 = vpack.c.b16 %v202, %v201
    %v217 = vpack.c.b16 %v204, %v203
    %v218 = vpack.c.b16 %v206, %v205
    %v219 = vpack.c.b16 %v208, %v207
    %v220 = vpack.c.b16 %v210, %v209
    %v221 = vpack.c.b16 %v212, %v211
    %v222 = vpack.c.b16 %v214, %v213
    %231 = vmatprep.subr.bf16.mxu0 0
    %232 = vmatpush1.bf16.msra.mxu0 %v215
    %233 = vmatprep.subr.bf16.mxu0 0
    %234 = vmatpush1.bf16.msra.mxu0 %v216
    %235 = vmatprep.subr.bf16.mxu0 0
    %236 = vmatpush1.bf16.msra.mxu0 %v217
    %237 = vmatprep.subr.bf16.mxu0 0
    %238 = vmatpush1.bf16.msra.mxu0 %v218
    %239 = vmatprep.subr.bf16.mxu0 0
    %240 = vmatpush1.bf16.msra.mxu0 %v219
    %241 = vmatprep.subr.bf16.mxu0 0
    %242 = vmatpush1.bf16.msra.mxu0 %v220
    %243 = vmatprep.subr.bf16.mxu0 0
    %244 = vmatpush1.bf16.msra.mxu0 %v221
    %245 = vmatprep.subr.bf16.mxu0 0
    %246 = vmatpush1.bf16.msra.mxu0 %v222
    %247 = vmatprep.subr.bf16.mxu0 0
    %248 = vmatpush1.bf16.msra.mxu0 0
    %249 = vmatprep.subr.bf16.mxu0 0
    %250 = vmatpush1.bf16.msra.mxu0 0
    %251 = vmatprep.subr.bf16.mxu0 0
    %252 = vmatpush1.bf16.msra.mxu0 0
    %253 = vmatprep.subr.bf16.mxu0 0
    %254 = vmatpush1.bf16.msra.mxu0 0
    %255 = vmatprep.subr.bf16.mxu0 0
    %256 = vmatpush1.bf16.msra.mxu0 0
    %257 = vmatprep.subr.bf16.mxu0 0
    %258 = vmatpush1.bf16.msra.mxu0 0
    %259 = vmatprep.subr.bf16.mxu0 0
    %260 = vmatpush1.bf16.msra.mxu0 0
    %261 = vmatprep.subr.bf16.mxu0 0
    %262 = vmatpush1.bf16.msra.mxu0 0
    %263 = vmatprep.mubr.bf16.mxu0 0
    %264 = vmatmul.mubr.bf16.gmra.mrb[0].mxu0 %v163
    %v265 = vpop.f32.mrb[0].mxu0
    %v266 = vadd.f32 0.0, %v265
    %v267 = vpop.f32.mrb[0].mxu0
    %v268 = vpop.f32.mrb[0].mxu0
    %v269 = vadd.f32 0.0, %v268
    %v270 = vpop.f32.mrb[0].mxu0
    %271 = vmatprep.mubr.bf16.mxu0 0
    %272 = vmatmul.mubr.bf16.gmra.mrb[0].mxu0 %v164
    %v273 = vpop.f32.mrb[0].mxu0
    %v274 = vadd.f32 0.0, %v273
    %v275 = vpop.f32.mrb[0].mxu0
    %v276 = vpop.f32.mrb[0].mxu0
    %v277 = vadd.f32 0.0, %v276
    %v278 = vpop.f32.mrb[0].mxu0
    %279 = vmatprep.mubr.bf16.mxu0 0
    %280 = vmatmul.mubr.bf16.gmra.mrb[0].mxu0 %v165
    %v281 = vpop.f32.mrb[0].mxu0
    %v282 = vadd.f32 0.0, %v281
    %v283 = vpop.f32.mrb[0].mxu0
    %v284 = vpop.f32.mrb[0].mxu0
    %v285 = vadd.f32 0.0, %v284
    %v286 = vpop.f32.mrb[0].mxu0
    %287 = vmatprep.mubr.bf16.mxu0 0
    %288 = vmatmul.mubr.bf16.gmra.mrb[0].mxu0 %v166
    %v289 = vpop.f32.mrb[0].mxu0
    %v290 = vadd.f32 0.0, %v289
    %v291 = vpop.f32.mrb[0].mxu0
    %v292 = vpop.f32.mrb[0].mxu0
    %v293 = vadd.f32 0.0, %v292
    %v294 = vpop.f32.mrb[0].mxu0
    %295 = vdwg.mxu0
    %v296 = vadd.f32 %v155, %v266
    %v297 = vadd.f32 %v156, %v269
    %v298 = vadd.f32 %v157, %v274
    %v299 = vadd.f32 %v158, %v277
    %v300 = vadd.f32 %v159, %v282
    %v301 = vadd.f32 %v160, %v285
    %v302 = vadd.f32 %v161, %v290
    %v303 = vadd.f32 %v162, %v293
    %304 = vst [vmem:[#allocation3] sm:$0xff] %v296
    %305 = vst [vmem:[#allocation3 + $0x8] sm:$0xff] %v297
    %306 = vst [vmem:[#allocation3 + $0x10] sm:$0xff] %v298
    %307 = vst [vmem:[#allocation3 + $0x18] sm:$0xff] %v299
    %308 = vst [vmem:[#allocation3 + $0x20] sm:$0xff] %v300
    %309 = vst [vmem:[#allocation3 + $0x28] sm:$0xff] %v301
    %310 = vst [vmem:[#allocation3 + $0x30] sm:$0xff] %v302
    %311 = vst [vmem:[#allocation3 + $0x38] sm:$0xff] %v303
    // Predicated region
    $region26: #{tpu_custom_call.1} parent=1 // pred_check
      %p312 = pneg %p42
    $region27: #{tpu_custom_call.1} parent=1 // pred_check_branch
      %314 = sbr.rel (%p312) target = $region29
    $region28: #{tpu_custom_call.1} parent=1 // pred_region
      %v315 = vld [vmem:[#allocation3] sm:$0xff]
      %316 = vst [vmem:[#allocation9] sm:$0xff] %v315
      %v317 = vld [vmem:[#allocation3 + $0x8] sm:$0xff]
      %s318 = scalar_lea.vmem [#allocation9], 8
      %319 = vst [vmem:[%s318] sm:$0xff] %v317
      %v320 = vld [vmem:[#allocation3 + $0x10] sm:$0xff]
      %s321 = scalar_lea.vmem [#allocation9], 16
      %322 = vst [vmem:[%s321] sm:$0xff] %v320
      %v323 = vld [vmem:[#allocation3 + $0x18] sm:$0xff]
      %s324 = scalar_lea.vmem [#allocation9], 24
      %325 = vst [vmem:[%s324] sm:$0xff] %v323
      %v326 = vld [vmem:[#allocation3 + $0x20] sm:$0xff]
      %s327 = scalar_lea.vmem [#allocation9], 32
      %328 = vst [vmem:[%s327] sm:$0xff] %v326
      %v329 = vld [vmem:[#allocation3 + $0x28] sm:$0xff]
      %s330 = scalar_lea.vmem [#allocation9], 40
      %331 = vst [vmem:[%s330] sm:$0xff] %v329
      %v332 = vld [vmem:[#allocation3 + $0x30] sm:$0xff]
      %s333 = scalar_lea.vmem [#allocation9], 48
      %334 = vst [vmem:[%s333] sm:$0xff] %v332
      %v335 = vld [vmem:[#allocation3 + $0x38] sm:$0xff]
      %s336 = scalar_lea.vmem [#allocation9], 56
      %337 = vst [vmem:[%s336] sm:$0xff] %v335
    $region29: #{tpu_custom_call.1} parent=1 // pred_fallthru
      _
    // Predicated region
    $region30: #{tpu_custom_call.1} parent=1 // pred_check
      _
    $region31: #{tpu_custom_call.1} parent=1 // pred_check_branch
      %339 = sbr.rel (0) target = $region33
    $region32: #{tpu_custom_call.1} parent=1 // pred_region
      %s341 = ssub.s32 1024, 1024
      %342 = vsyncadd [#allocation6], %s341
      %s343 = sshll.u32 [#allocation9], 4
      %s344 = int_to_ptr.vmem [resolvable:$true] %s343
      %349 = dma.vmem_to_hbm [thread:$0]  %s344, 1024, %s3, [#allocation6], 128, 128, 8
    $region33: #{tpu_custom_call.1} parent=1 // pred_fallthru
      _
    // Predicated region
    $region34: #{tpu_custom_call.1} parent=1 // pred_check
      _
    $region35: #{tpu_custom_call.1} parent=1 // pred_check_branch
      %351 = sbr.rel (0) target = $region37
    $region36: #{tpu_custom_call.1} parent=1 // pred_region
      %352 = dma.done [#allocation6], 1024
    $region37: #{tpu_custom_call.1} parent=1 // pred_fallthru
      _
    %353 = vsyncpa [#allocation5], 1
    %354 = vsyncpa [#allocation8], 1
    %355 = vsyncpa [#allocation6], 1

</llo_original>
